<compile_context>
chip_gen: v5e
topology: v5e:2x2
jax: 0.10.0
libtpu: 0.0.40
codegen_flags: <defaults>
</compile_context>

<pallas_src>
import math
import numpy as np
import jax
import jax.numpy as jnp
from jax.experimental import pallas as pl
from jax.experimental.pallas import tpu as pltpu


# ----------------------------- helpers --------------------------------------

def _softplus(x):
    # numerically stable softplus, identical formula used in wrapper & reference
    return jnp.maximum(x, 0.0) + jnp.log1p(jnp.exp(-jnp.abs(x)))


# ----------------------------- parameters -----------------------------------

def init_params(channels=4, filters=(3, 3, 3, 3), init_scale=10.0, seed=0):
    """Deterministic re-creation of EntropyBottleneckVbr.__init__ parameters."""
    full = (1,) + tuple(filters) + (1,)
    scale = init_scale ** (1.0 / (len(filters) + 1))
    key = jax.random.PRNGKey(seed)

    matrices, biases, factors = [], [], []
    for i in range(len(filters) + 1):
        init = float(math.log(math.expm1(1.0 / scale / full[i + 1])))
        m = jnp.full((channels, full[i + 1], full[i]), init, dtype=jnp.float32)
        key, k = jax.random.split(key)
        b = jax.random.uniform(k, (channels, full[i + 1], 1),
                               dtype=jnp.float32, minval=-0.5, maxval=0.5)
        matrices.append(m)
        biases.append(b)
        if i < len(filters):
            factors.append(jnp.zeros((channels, full[i + 1], 1), dtype=jnp.float32))

    quantiles = jnp.tile(
        jnp.array([-init_scale, 0.0, init_scale], dtype=jnp.float32),
        (channels, 1, 1))  # (C, 1, 3)

    return {
        "matrices": matrices,
        "biases": biases,
        "factors": factors,
        "quantiles": quantiles,
        "full_filters": full,
    }


# ----------------------------- Pallas kernel --------------------------------

def make_kernel(full_filters, likelihood_bound, channels):
    nf = len(full_filters) - 1  # number of layers (= len(filters)+1 = 5)
    C = channels

    def kernel(*refs):
        # refs: x, medians, w0..w{nf-1}, b0..b{nf-1}, t0..t{nf-2}, out, lik
        x_ref, med_ref = refs[0], refs[1]
        w_refs = refs[2: 2 + nf]                       # softplus(matrix), (2C, fo*fi)
        b_refs = refs[2 + nf: 2 + 2 * nf]              # bias,             (2C, fo)
        t_refs = refs[2 + 2 * nf: 2 + 3 * nf - 1]      # tanh(factor),     (2C, fo)
        out_ref, lik_ref = refs[-2], refs[-1]

        x = x_ref[...]        # (C, TM)
        med = med_ref[...]    # (C, 1)

        # quantize(mode='dequantize', means=medians): round(x - m) + m
        outputs = jnp.round(x - med) + med
        out_ref[...] = outputs

        # Stack lower/upper inputs along the sublane (channel) axis so the
        # cumulative-logits chain is evaluated once at full vreg occupancy.
        v = jnp.concatenate([outputs - 0.5, outputs + 0.5], axis=0)  # (2C, TM)

        rows = [v]
        for i in range(nf):
            fi = full_filters[i]
            fo = full_filters[i + 1]
            Wm = w_refs[i][...]                         # (2C, fo*fi) pre-softplus'd
            B = b_refs[i][...]                          # (2C, fo)
            T = t_refs[i][...] if i < nf - 1 else None  # (2C, fo)   pre-tanh'd
            new_rows = []
            for o in range(fo):
                s = B[:, o:o + 1]                       # (2C, 1) broadcast
                for j in range(fi):
                    k = o * fi + j
                    s = s + Wm[:, k:k + 1] * rows[j]
                if T is not None:
                    s = s + T[:, o:o + 1] * jnp.tanh(s)
                new_rows.append(s)
            rows = new_rows
        logits = rows[0]                                # (2C, TM)

        lower = logits[:C, :]
        upper = logits[C:, :]
        lik = jax.nn.sigmoid(upper) - jax.nn.sigmoid(lower)
        # likelihood lower bound (LowerBound forward = max)
        lik_ref[...] = jnp.maximum(lik, likelihood_bound)

    return kernel


# ----------------------------- wrapper ---------------------------------------

def entropy_bottleneck_forward(x, params, *, tm=2048, likelihood_bound=1e-9):
    """x: (N, C, H, W) float32.  Returns (outputs, likelihood), both NCHW."""
    N, C, H, W = x.shape
    M = N * H * W
    xc = jnp.transpose(x, (1, 0, 2, 3)).reshape(C, M)

    # Tile size: multiple of 128, clamped so small problems are not over-padded.
    m128 = ((M + 127) // 128) * 128
    tm_eff = max(128, min(int(tm), m128))
    n_blocks = pl.cdiv(M, tm_eff)
    Mp = n_blocks * tm_eff
    if Mp != M:
        xc = jnp.pad(xc, ((0, 0), (0, Mp - M)))

    medians = params["quantiles"][:, :, 1]                     # (C, 1)

    # Precompute softplus(matrices) / tanh(factors) once in the wrapper (tiny
    # arrays) and tile 2x along channels for the stacked lower/upper pass.
    w2 = [jnp.tile(_softplus(m).reshape(C, -1), (2, 1)) for m in params["matrices"]]
    b2 = [jnp.tile(b.reshape(C, -1), (2, 1)) for b in params["biases"]]
    t2 = [jnp.tile(jnp.tanh(f).reshape(C, -1), (2, 1)) for f in params["factors"]]
    full_filters = params["full_filters"]

    def whole(arr):
        # whole (tiny) array resident every grid step (block == full array)
        return pl.BlockSpec(arr.shape, lambda i: (0, 0))

    in_specs = [pl.BlockSpec((C, tm_eff), lambda i: (0, i)), whole(medians)]
    in_specs += [whole(a) for a in (w2 + b2 + t2)]
    out_specs = (pl.BlockSpec((C, tm_eff), lambda i: (0, i)),
                 pl.BlockSpec((C, tm_eff), lambda i: (0, i)))

    kernel = make_kernel(full_filters, likelihood_bound, C)

    out, lik = pl.pallas_call(
        kernel,
        out_shape=(jax.ShapeDtypeStruct((C, Mp), x.dtype),
                   jax.ShapeDtypeStruct((C, Mp), x.dtype)),
        grid=(n_blocks,),
        in_specs=in_specs,
        out_specs=out_specs,
        compiler_params=pltpu.CompilerParams(
            dimension_semantics=("parallel",)),
    )(xc, medians, *w2, *b2, *t2)

    out = out[:, :M].reshape(C, N, H, W).transpose(1, 0, 2, 3)
    lik = lik[:, :M].reshape(C, N, H, W).transpose(1, 0, 2, 3)
    return out, lik


# ----------------------------- pure-JAX reference ----------------------------

def reference_forward(x, params, likelihood_bound=1e-9):
    N, C, H, W = x.shape
    v = jnp.transpose(x, (1, 0, 2, 3)).reshape(C, 1, -1)
    med = params["quantiles"][:, :, 1:2][:, :, None][:, :, 0]   # (C, 1, 1)
    out = jnp.round(v - med) + med

    def logits(u):
        l = u
        for i in range(len(params["matrices"])):
            Wm = _softplus(params["matrices"][i])
            l = jnp.einsum("cof,cfm->com", Wm, l) + params["biases"][i]
            if i < len(params["factors"]):
                l = l + jnp.tanh(params["factors"][i]) * jnp.tanh(l)
        return l

    lower = logits(out - 0.5)
    upper = logits(out + 0.5)
    lik = jax.nn.sigmoid(upper) - jax.nn.sigmoid(lower)
    lik = jnp.maximum(lik, likelihood_bound)

    out = out.reshape(C, N, H, W).transpose(1, 0, 2, 3)
    lik = lik.reshape(C, N, H, W).transpose(1, 0, 2, 3)
    return out, lik


# ----------------------------- main ------------------------------------------

if __name__ == "__main__":
    N, C, H, W = 2, 4, 16, 16
    params = init_params(channels=C, filters=(3, 3, 3, 3), init_scale=10.0, seed=0)

    key = jax.random.PRNGKey(0)
    x = 3.0 * jax.random.normal(key, (N, C, H, W), dtype=jnp.float32)

    out, lik = entropy_bottleneck_forward(x, params)
    out = jax.block_until_ready(out)
    lik = jax.block_until_ready(lik)

    out_ref, lik_ref = reference_forward(x, params)
    np.testing.assert_allclose(np.asarray(out), np.asarray(out_ref),
                               rtol=1e-5, atol=1e-6)
    np.testing.assert_allclose(np.asarray(lik), np.asarray(lik_ref),
                               rtol=1e-5, atol=1e-6)

    print("KERNEL_OK")
</pallas_src>

<mosaic_0001>
module attributes {stable_mosaic.version = 11 : i64} {
  func.func @kernel(%arg0: i32, %arg1: memref<4x512xf32, #tpu.memory_space<vmem>>, %arg2: memref<4x1xf32, #tpu.memory_space<vmem>>, %arg3: memref<8x3xf32, #tpu.memory_space<vmem>>, %arg4: memref<8x9xf32, #tpu.memory_space<vmem>>, %arg5: memref<8x9xf32, #tpu.memory_space<vmem>>, %arg6: memref<8x9xf32, #tpu.memory_space<vmem>>, %arg7: memref<8x3xf32, #tpu.memory_space<vmem>>, %arg8: memref<8x3xf32, #tpu.memory_space<vmem>>, %arg9: memref<8x3xf32, #tpu.memory_space<vmem>>, %arg10: memref<8x3xf32, #tpu.memory_space<vmem>>, %arg11: memref<8x3xf32, #tpu.memory_space<vmem>>, %arg12: memref<8x1xf32, #tpu.memory_space<vmem>>, %arg13: memref<8x3xf32, #tpu.memory_space<vmem>>, %arg14: memref<8x3xf32, #tpu.memory_space<vmem>>, %arg15: memref<8x3xf32, #tpu.memory_space<vmem>>, %arg16: memref<8x3xf32, #tpu.memory_space<vmem>>, %arg17: memref<4x512xf32, #tpu.memory_space<vmem>>, %arg18: memref<4x512xf32, #tpu.memory_space<vmem>>) attributes {dimension_semantics = [#tpu.dimension_semantics<parallel>], iteration_bounds = array<i64: 1>, scalar_prefetch = 0 : i64, scratch_operands = 0 : i64, tpu.core_type = #tpu.core_type<tc>, window_params = [{transform_indices = @transform_0, window_bounds = array<i64: 4, 512>}, {pipeline_mode = #tpu.pipeline_mode<synchronous>, transform_indices = @transform_1, window_bounds = array<i64: 4, 1>}, {pipeline_mode = #tpu.pipeline_mode<synchronous>, transform_indices = @transform_2, window_bounds = array<i64: 8, 3>}, {pipeline_mode = #tpu.pipeline_mode<synchronous>, transform_indices = @transform_3, window_bounds = array<i64: 8, 9>}, {pipeline_mode = #tpu.pipeline_mode<synchronous>, transform_indices = @transform_4, window_bounds = array<i64: 8, 9>}, {pipeline_mode = #tpu.pipeline_mode<synchronous>, transform_indices = @transform_5, window_bounds = array<i64: 8, 9>}, {pipeline_mode = #tpu.pipeline_mode<synchronous>, transform_indices = @transform_6, window_bounds = array<i64: 8, 3>}, {pipeline_mode = #tpu.pipeline_mode<synchronous>, transform_indices = @transform_7, window_bounds = array<i64: 8, 3>}, {pipeline_mode = #tpu.pipeline_mode<synchronous>, transform_indices = @transform_8, window_bounds = array<i64: 8, 3>}, {pipeline_mode = #tpu.pipeline_mode<synchronous>, transform_indices = @transform_9, window_bounds = array<i64: 8, 3>}, {pipeline_mode = #tpu.pipeline_mode<synchronous>, transform_indices = @transform_10, window_bounds = array<i64: 8, 3>}, {pipeline_mode = #tpu.pipeline_mode<synchronous>, transform_indices = @transform_11, window_bounds = array<i64: 8, 1>}, {pipeline_mode = #tpu.pipeline_mode<synchronous>, transform_indices = @transform_12, window_bounds = array<i64: 8, 3>}, {pipeline_mode = #tpu.pipeline_mode<synchronous>, transform_indices = @transform_13, window_bounds = array<i64: 8, 3>}, {pipeline_mode = #tpu.pipeline_mode<synchronous>, transform_indices = @transform_14, window_bounds = array<i64: 8, 3>}, {pipeline_mode = #tpu.pipeline_mode<synchronous>, transform_indices = @transform_15, window_bounds = array<i64: 8, 3>}, {transform_indices = @transform_16, window_bounds = array<i64: 4, 512>}, {transform_indices = @transform_17, window_bounds = array<i64: 4, 512>}]} {
    %c0 = arith.constant 0 : index
    %c0_0 = arith.constant 0 : index
    %0 = vector.load %arg1[%c0, %c0_0] : memref<4x512xf32, #tpu.memory_space<vmem>>, vector<4x512xf32>
    %c0_1 = arith.constant 0 : index
    %c0_2 = arith.constant 0 : index
    %1 = vector.load %arg2[%c0_1, %c0_2] : memref<4x1xf32, #tpu.memory_space<vmem>>, vector<4x1xf32>
    %2 = vector.broadcast %1 : vector<4x1xf32> to vector<4x512xf32>
    %3 = arith.subf %0, %2 : vector<4x512xf32>
    %4 = math.roundeven %3 : vector<4x512xf32>
    %5 = vector.broadcast %1 : vector<4x1xf32> to vector<4x512xf32>
    %6 = arith.addf %4, %5 : vector<4x512xf32>
    %c0_3 = arith.constant 0 : index
    %c0_4 = arith.constant 0 : index
    %7 = vector.load %arg17[%c0_3, %c0_4] : memref<4x512xf32, #tpu.memory_space<vmem>>, vector<4x512xf32>
    tpu.vector_store %arg17[%c0_3, %c0_4], %6 {strides = array<i32>} : memref<4x512xf32, #tpu.memory_space<vmem>>, vector<4x512xf32>,
    %cst = arith.constant 5.000000e-01 : f32
    %8 = vector.broadcast %cst : f32 to vector<4x512xf32>
    %9 = arith.subf %6, %8 : vector<4x512xf32>
    %cst_5 = arith.constant 5.000000e-01 : f32
    %10 = vector.broadcast %cst_5 : f32 to vector<4x512xf32>
    %11 = arith.addf %6, %10 : vector<4x512xf32>
    %12 = tpu.concatenate %9, %11 in 0 : vector<4x512xf32>, vector<4x512xf32> -> vector<8x512xf32>
    %c0_6 = arith.constant 0 : index
    %c0_7 = arith.constant 0 : index
    %13 = vector.load %arg3[%c0_6, %c0_7] : memref<8x3xf32, #tpu.memory_space<vmem>>, vector<8x3xf32>
    %c0_8 = arith.constant 0 : index
    %c0_9 = arith.constant 0 : index
    %14 = vector.load %arg8[%c0_8, %c0_9] : memref<8x3xf32, #tpu.memory_space<vmem>>, vector<8x3xf32>
    %c0_10 = arith.constant 0 : index
    %c0_11 = arith.constant 0 : index
    %15 = vector.load %arg13[%c0_10, %c0_11] : memref<8x3xf32, #tpu.memory_space<vmem>>, vector<8x3xf32>
    %16 = vector.extract_strided_slice %14 {offsets = [0, 0], sizes = [8, 1], strides = [1, 1]} : vector<8x3xf32> to vector<8x1xf32>
    %17 = vector.extract_strided_slice %13 {offsets = [0, 0], sizes = [8, 1], strides = [1, 1]} : vector<8x3xf32> to vector<8x1xf32>
    %18 = vector.broadcast %17 : vector<8x1xf32> to vector<8x512xf32>
    %19 = arith.mulf %18, %12 : vector<8x512xf32>
    %20 = vector.broadcast %16 : vector<8x1xf32> to vector<8x512xf32>
    %21 = arith.addf %20, %19 : vector<8x512xf32>
    %22 = vector.extract_strided_slice %15 {offsets = [0, 0], sizes = [8, 1], strides = [1, 1]} : vector<8x3xf32> to vector<8x1xf32>
    %23 = math.tanh %21 : vector<8x512xf32>
    %24 = vector.broadcast %22 : vector<8x1xf32> to vector<8x512xf32>
    %25 = arith.mulf %24, %23 : vector<8x512xf32>
    %26 = arith.addf %21, %25 : vector<8x512xf32>
    %27 = vector.extract_strided_slice %14 {offsets = [0, 1], sizes = [8, 1], strides = [1, 1]} : vector<8x3xf32> to vector<8x1xf32>
    %28 = vector.extract_strided_slice %13 {offsets = [0, 1], sizes = [8, 1], strides = [1, 1]} : vector<8x3xf32> to vector<8x1xf32>
    %29 = vector.broadcast %28 : vector<8x1xf32> to vector<8x512xf32>
    %30 = arith.mulf %29, %12 : vector<8x512xf32>
    %31 = vector.broadcast %27 : vector<8x1xf32> to vector<8x512xf32>
    %32 = arith.addf %31, %30 : vector<8x512xf32>
    %33 = vector.extract_strided_slice %15 {offsets = [0, 1], sizes = [8, 1], strides = [1, 1]} : vector<8x3xf32> to vector<8x1xf32>
    %34 = math.tanh %32 : vector<8x512xf32>
    %35 = vector.broadcast %33 : vector<8x1xf32> to vector<8x512xf32>
    %36 = arith.mulf %35, %34 : vector<8x512xf32>
    %37 = arith.addf %32, %36 : vector<8x512xf32>
    %38 = vector.extract_strided_slice %14 {offsets = [0, 2], sizes = [8, 1], strides = [1, 1]} : vector<8x3xf32> to vector<8x1xf32>
    %39 = vector.extract_strided_slice %13 {offsets = [0, 2], sizes = [8, 1], strides = [1, 1]} : vector<8x3xf32> to vector<8x1xf32>
    %40 = vector.broadcast %39 : vector<8x1xf32> to vector<8x512xf32>
    %41 = arith.mulf %40, %12 : vector<8x512xf32>
    %42 = vector.broadcast %38 : vector<8x1xf32> to vector<8x512xf32>
    %43 = arith.addf %42, %41 : vector<8x512xf32>
    %44 = vector.extract_strided_slice %15 {offsets = [0, 2], sizes = [8, 1], strides = [1, 1]} : vector<8x3xf32> to vector<8x1xf32>
    %45 = math.tanh %43 : vector<8x512xf32>
    %46 = vector.broadcast %44 : vector<8x1xf32> to vector<8x512xf32>
    %47 = arith.mulf %46, %45 : vector<8x512xf32>
    %48 = arith.addf %43, %47 : vector<8x512xf32>
    %c0_12 = arith.constant 0 : index
    %c0_13 = arith.constant 0 : index
    %49 = vector.load %arg4[%c0_12, %c0_13] : memref<8x9xf32, #tpu.memory_space<vmem>>, vector<8x9xf32>
    %c0_14 = arith.constant 0 : index
    %c0_15 = arith.constant 0 : index
    %50 = vector.load %arg9[%c0_14, %c0_15] : memref<8x3xf32, #tpu.memory_space<vmem>>, vector<8x3xf32>
    %c0_16 = arith.constant 0 : index
    %c0_17 = arith.constant 0 : index
    %51 = vector.load %arg14[%c0_16, %c0_17] : memref<8x3xf32, #tpu.memory_space<vmem>>, vector<8x3xf32>
    %52 = vector.extract_strided_slice %50 {offsets = [0, 0], sizes = [8, 1], strides = [1, 1]} : vector<8x3xf32> to vector<8x1xf32>
    %53 = vector.extract_strided_slice %49 {offsets = [0, 0], sizes = [8, 1], strides = [1, 1]} : vector<8x9xf32> to vector<8x1xf32>
    %54 = vector.broadcast %53 : vector<8x1xf32> to vector<8x512xf32>
    %55 = arith.mulf %54, %26 : vector<8x512xf32>
    %56 = vector.broadcast %52 : vector<8x1xf32> to vector<8x512xf32>
    %57 = arith.addf %56, %55 : vector<8x512xf32>
    %58 = vector.extract_strided_slice %49 {offsets = [0, 1], sizes = [8, 1], strides = [1, 1]} : vector<8x9xf32> to vector<8x1xf32>
    %59 = vector.broadcast %58 : vector<8x1xf32> to vector<8x512xf32>
    %60 = arith.mulf %59, %37 : vector<8x512xf32>
    %61 = arith.addf %57, %60 : vector<8x512xf32>
    %62 = vector.extract_strided_slice %49 {offsets = [0, 2], sizes = [8, 1], strides = [1, 1]} : vector<8x9xf32> to vector<8x1xf32>
    %63 = vector.broadcast %62 : vector<8x1xf32> to vector<8x512xf32>
    %64 = arith.mulf %63, %48 : vector<8x512xf32>
    %65 = arith.addf %61, %64 : vector<8x512xf32>
    %66 = vector.extract_strided_slice %51 {offsets = [0, 0], sizes = [8, 1], strides = [1, 1]} : vector<8x3xf32> to vector<8x1xf32>
    %67 = math.tanh %65 : vector<8x512xf32>
    %68 = vector.broadcast %66 : vector<8x1xf32> to vector<8x512xf32>
    %69 = arith.mulf %68, %67 : vector<8x512xf32>
    %70 = arith.addf %65, %69 : vector<8x512xf32>
    %71 = vector.extract_strided_slice %50 {offsets = [0, 1], sizes = [8, 1], strides = [1, 1]} : vector<8x3xf32> to vector<8x1xf32>
    %72 = vector.extract_strided_slice %49 {offsets = [0, 3], sizes = [8, 1], strides = [1, 1]} : vector<8x9xf32> to vector<8x1xf32>
    %73 = vector.broadcast %72 : vector<8x1xf32> to vector<8x512xf32>
    %74 = arith.mulf %73, %26 : vector<8x512xf32>
    %75 = vector.broadcast %71 : vector<8x1xf32> to vector<8x512xf32>
    %76 = arith.addf %75, %74 : vector<8x512xf32>
    %77 = vector.extract_strided_slice %49 {offsets = [0, 4], sizes = [8, 1], strides = [1, 1]} : vector<8x9xf32> to vector<8x1xf32>
    %78 = vector.broadcast %77 : vector<8x1xf32> to vector<8x512xf32>
    %79 = arith.mulf %78, %37 : vector<8x512xf32>
    %80 = arith.addf %76, %79 : vector<8x512xf32>
    %81 = vector.extract_strided_slice %49 {offsets = [0, 5], sizes = [8, 1], strides = [1, 1]} : vector<8x9xf32> to vector<8x1xf32>
    %82 = vector.broadcast %81 : vector<8x1xf32> to vector<8x512xf32>
    %83 = arith.mulf %82, %48 : vector<8x512xf32>
    %84 = arith.addf %80, %83 : vector<8x512xf32>
    %85 = vector.extract_strided_slice %51 {offsets = [0, 1], sizes = [8, 1], strides = [1, 1]} : vector<8x3xf32> to vector<8x1xf32>
    %86 = math.tanh %84 : vector<8x512xf32>
    %87 = vector.broadcast %85 : vector<8x1xf32> to vector<8x512xf32>
    %88 = arith.mulf %87, %86 : vector<8x512xf32>
    %89 = arith.addf %84, %88 : vector<8x512xf32>
    %90 = vector.extract_strided_slice %50 {offsets = [0, 2], sizes = [8, 1], strides = [1, 1]} : vector<8x3xf32> to vector<8x1xf32>
    %91 = vector.extract_strided_slice %49 {offsets = [0, 6], sizes = [8, 1], strides = [1, 1]} : vector<8x9xf32> to vector<8x1xf32>
    %92 = vector.broadcast %91 : vector<8x1xf32> to vector<8x512xf32>
    %93 = arith.mulf %92, %26 : vector<8x512xf32>
    %94 = vector.broadcast %90 : vector<8x1xf32> to vector<8x512xf32>
    %95 = arith.addf %94, %93 : vector<8x512xf32>
    %96 = vector.extract_strided_slice %49 {offsets = [0, 7], sizes = [8, 1], strides = [1, 1]} : vector<8x9xf32> to vector<8x1xf32>
    %97 = vector.broadcast %96 : vector<8x1xf32> to vector<8x512xf32>
    %98 = arith.mulf %97, %37 : vector<8x512xf32>
    %99 = arith.addf %95, %98 : vector<8x512xf32>
    %100 = vector.extract_strided_slice %49 {offsets = [0, 8], sizes = [8, 1], strides = [1, 1]} : vector<8x9xf32> to vector<8x1xf32>
    %101 = vector.broadcast %100 : vector<8x1xf32> to vector<8x512xf32>
    %102 = arith.mulf %101, %48 : vector<8x512xf32>
    %103 = arith.addf %99, %102 : vector<8x512xf32>
    %104 = vector.extract_strided_slice %51 {offsets = [0, 2], sizes = [8, 1], strides = [1, 1]} : vector<8x3xf32> to vector<8x1xf32>
    %105 = math.tanh %103 : vector<8x512xf32>
    %106 = vector.broadcast %104 : vector<8x1xf32> to vector<8x512xf32>
    %107 = arith.mulf %106, %105 : vector<8x512xf32>
    %108 = arith.addf %103, %107 : vector<8x512xf32>
    %c0_18 = arith.constant 0 : index
    %c0_19 = arith.constant 0 : index
    %109 = vector.load %arg5[%c0_18, %c0_19] : memref<8x9xf32, #tpu.memory_space<vmem>>, vector<8x9xf32>
    %c0_20 = arith.constant 0 : index
    %c0_21 = arith.constant 0 : index
    %110 = vector.load %arg10[%c0_20, %c0_21] : memref<8x3xf32, #tpu.memory_space<vmem>>, vector<8x3xf32>
    %c0_22 = arith.constant 0 : index
    %c0_23 = arith.constant 0 : index
    %111 = vector.load %arg15[%c0_22, %c0_23] : memref<8x3xf32, #tpu.memory_space<vmem>>, vector<8x3xf32>
    %112 = vector.extract_strided_slice %110 {offsets = [0, 0], sizes = [8, 1], strides = [1, 1]} : vector<8x3xf32> to vector<8x1xf32>
    %113 = vector.extract_strided_slice %109 {offsets = [0, 0], sizes = [8, 1], strides = [1, 1]} : vector<8x9xf32> to vector<8x1xf32>
    %114 = vector.broadcast %113 : vector<8x1xf32> to vector<8x512xf32>
    %115 = arith.mulf %114, %70 : vector<8x512xf32>
    %116 = vector.broadcast %112 : vector<8x1xf32> to vector<8x512xf32>
    %117 = arith.addf %116, %115 : vector<8x512xf32>
    %118 = vector.extract_strided_slice %109 {offsets = [0, 1], sizes = [8, 1], strides = [1, 1]} : vector<8x9xf32> to vector<8x1xf32>
    %119 = vector.broadcast %118 : vector<8x1xf32> to vector<8x512xf32>
    %120 = arith.mulf %119, %89 : vector<8x512xf32>
    %121 = arith.addf %117, %120 : vector<8x512xf32>
    %122 = vector.extract_strided_slice %109 {offsets = [0, 2], sizes = [8, 1], strides = [1, 1]} : vector<8x9xf32> to vector<8x1xf32>
    %123 = vector.broadcast %122 : vector<8x1xf32> to vector<8x512xf32>
    %124 = arith.mulf %123, %108 : vector<8x512xf32>
    %125 = arith.addf %121, %124 : vector<8x512xf32>
    %126 = vector.extract_strided_slice %111 {offsets = [0, 0], sizes = [8, 1], strides = [1, 1]} : vector<8x3xf32> to vector<8x1xf32>
    %127 = math.tanh %125 : vector<8x512xf32>
    %128 = vector.broadcast %126 : vector<8x1xf32> to vector<8x512xf32>
    %129 = arith.mulf %128, %127 : vector<8x512xf32>
    %130 = arith.addf %125, %129 : vector<8x512xf32>
    %131 = vector.extract_strided_slice %110 {offsets = [0, 1], sizes = [8, 1], strides = [1, 1]} : vector<8x3xf32> to vector<8x1xf32>
    %132 = vector.extract_strided_slice %109 {offsets = [0, 3], sizes = [8, 1], strides = [1, 1]} : vector<8x9xf32> to vector<8x1xf32>
    %133 = vector.broadcast %132 : vector<8x1xf32> to vector<8x512xf32>
    %134 = arith.mulf %133, %70 : vector<8x512xf32>
    %135 = vector.broadcast %131 : vector<8x1xf32> to vector<8x512xf32>
    %136 = arith.addf %135, %134 : vector<8x512xf32>
    %137 = vector.extract_strided_slice %109 {offsets = [0, 4], sizes = [8, 1], strides = [1, 1]} : vector<8x9xf32> to vector<8x1xf32>
    %138 = vector.broadcast %137 : vector<8x1xf32> to vector<8x512xf32>
    %139 = arith.mulf %138, %89 : vector<8x512xf32>
    %140 = arith.addf %136, %139 : vector<8x512xf32>
    %141 = vector.extract_strided_slice %109 {offsets = [0, 5], sizes = [8, 1], strides = [1, 1]} : vector<8x9xf32> to vector<8x1xf32>
    %142 = vector.broadcast %141 : vector<8x1xf32> to vector<8x512xf32>
    %143 = arith.mulf %142, %108 : vector<8x512xf32>
    %144 = arith.addf %140, %143 : vector<8x512xf32>
    %145 = vector.extract_strided_slice %111 {offsets = [0, 1], sizes = [8, 1], strides = [1, 1]} : vector<8x3xf32> to vector<8x1xf32>
    %146 = math.tanh %144 : vector<8x512xf32>
    %147 = vector.broadcast %145 : vector<8x1xf32> to vector<8x512xf32>
    %148 = arith.mulf %147, %146 : vector<8x512xf32>
    %149 = arith.addf %144, %148 : vector<8x512xf32>
    %150 = vector.extract_strided_slice %110 {offsets = [0, 2], sizes = [8, 1], strides = [1, 1]} : vector<8x3xf32> to vector<8x1xf32>
    %151 = vector.extract_strided_slice %109 {offsets = [0, 6], sizes = [8, 1], strides = [1, 1]} : vector<8x9xf32> to vector<8x1xf32>
    %152 = vector.broadcast %151 : vector<8x1xf32> to vector<8x512xf32>
    %153 = arith.mulf %152, %70 : vector<8x512xf32>
    %154 = vector.broadcast %150 : vector<8x1xf32> to vector<8x512xf32>
    %155 = arith.addf %154, %153 : vector<8x512xf32>
    %156 = vector.extract_strided_slice %109 {offsets = [0, 7], sizes = [8, 1], strides = [1, 1]} : vector<8x9xf32> to vector<8x1xf32>
    %157 = vector.broadcast %156 : vector<8x1xf32> to vector<8x512xf32>
    %158 = arith.mulf %157, %89 : vector<8x512xf32>
    %159 = arith.addf %155, %158 : vector<8x512xf32>
    %160 = vector.extract_strided_slice %109 {offsets = [0, 8], sizes = [8, 1], strides = [1, 1]} : vector<8x9xf32> to vector<8x1xf32>
    %161 = vector.broadcast %160 : vector<8x1xf32> to vector<8x512xf32>
    %162 = arith.mulf %161, %108 : vector<8x512xf32>
    %163 = arith.addf %159, %162 : vector<8x512xf32>
    %164 = vector.extract_strided_slice %111 {offsets = [0, 2], sizes = [8, 1], strides = [1, 1]} : vector<8x3xf32> to vector<8x1xf32>
    %165 = math.tanh %163 : vector<8x512xf32>
    %166 = vector.broadcast %164 : vector<8x1xf32> to vector<8x512xf32>
    %167 = arith.mulf %166, %165 : vector<8x512xf32>
    %168 = arith.addf %163, %167 : vector<8x512xf32>
    %c0_24 = arith.constant 0 : index
    %c0_25 = arith.constant 0 : index
    %169 = vector.load %arg6[%c0_24, %c0_25] : memref<8x9xf32, #tpu.memory_space<vmem>>, vector<8x9xf32>
    %c0_26 = arith.constant 0 : index
    %c0_27 = arith.constant 0 : index
    %170 = vector.load %arg11[%c0_26, %c0_27] : memref<8x3xf32, #tpu.memory_space<vmem>>, vector<8x3xf32>
    %c0_28 = arith.constant 0 : index
    %c0_29 = arith.constant 0 : index
    %171 = vector.load %arg16[%c0_28, %c0_29] : memref<8x3xf32, #tpu.memory_space<vmem>>, vector<8x3xf32>
    %172 = vector.extract_strided_slice %170 {offsets = [0, 0], sizes = [8, 1], strides = [1, 1]} : vector<8x3xf32> to vector<8x1xf32>
    %173 = vector.extract_strided_slice %169 {offsets = [0, 0], sizes = [8, 1], strides = [1, 1]} : vector<8x9xf32> to vector<8x1xf32>
    %174 = vector.broadcast %173 : vector<8x1xf32> to vector<8x512xf32>
    %175 = arith.mulf %174, %130 : vector<8x512xf32>
    %176 = vector.broadcast %172 : vector<8x1xf32> to vector<8x512xf32>
    %177 = arith.addf %176, %175 : vector<8x512xf32>
    %178 = vector.extract_strided_slice %169 {offsets = [0, 1], sizes = [8, 1], strides = [1, 1]} : vector<8x9xf32> to vector<8x1xf32>
    %179 = vector.broadcast %178 : vector<8x1xf32> to vector<8x512xf32>
    %180 = arith.mulf %179, %149 : vector<8x512xf32>
    %181 = arith.addf %177, %180 : vector<8x512xf32>
    %182 = vector.extract_strided_slice %169 {offsets = [0, 2], sizes = [8, 1], strides = [1, 1]} : vector<8x9xf32> to vector<8x1xf32>
    %183 = vector.broadcast %182 : vector<8x1xf32> to vector<8x512xf32>
    %184 = arith.mulf %183, %168 : vector<8x512xf32>
    %185 = arith.addf %181, %184 : vector<8x512xf32>
    %186 = vector.extract_strided_slice %171 {offsets = [0, 0], sizes = [8, 1], strides = [1, 1]} : vector<8x3xf32> to vector<8x1xf32>
    %187 = math.tanh %185 : vector<8x512xf32>
    %188 = vector.broadcast %186 : vector<8x1xf32> to vector<8x512xf32>
    %189 = arith.mulf %188, %187 : vector<8x512xf32>
    %190 = arith.addf %185, %189 : vector<8x512xf32>
    %191 = vector.extract_strided_slice %170 {offsets = [0, 1], sizes = [8, 1], strides = [1, 1]} : vector<8x3xf32> to vector<8x1xf32>
    %192 = vector.extract_strided_slice %169 {offsets = [0, 3], sizes = [8, 1], strides = [1, 1]} : vector<8x9xf32> to vector<8x1xf32>
    %193 = vector.broadcast %192 : vector<8x1xf32> to vector<8x512xf32>
    %194 = arith.mulf %193, %130 : vector<8x512xf32>
    %195 = vector.broadcast %191 : vector<8x1xf32> to vector<8x512xf32>
    %196 = arith.addf %195, %194 : vector<8x512xf32>
    %197 = vector.extract_strided_slice %169 {offsets = [0, 4], sizes = [8, 1], strides = [1, 1]} : vector<8x9xf32> to vector<8x1xf32>
    %198 = vector.broadcast %197 : vector<8x1xf32> to vector<8x512xf32>
    %199 = arith.mulf %198, %149 : vector<8x512xf32>
    %200 = arith.addf %196, %199 : vector<8x512xf32>
    %201 = vector.extract_strided_slice %169 {offsets = [0, 5], sizes = [8, 1], strides = [1, 1]} : vector<8x9xf32> to vector<8x1xf32>
    %202 = vector.broadcast %201 : vector<8x1xf32> to vector<8x512xf32>
    %203 = arith.mulf %202, %168 : vector<8x512xf32>
    %204 = arith.addf %200, %203 : vector<8x512xf32>
    %205 = vector.extract_strided_slice %171 {offsets = [0, 1], sizes = [8, 1], strides = [1, 1]} : vector<8x3xf32> to vector<8x1xf32>
    %206 = math.tanh %204 : vector<8x512xf32>
    %207 = vector.broadcast %205 : vector<8x1xf32> to vector<8x512xf32>
    %208 = arith.mulf %207, %206 : vector<8x512xf32>
    %209 = arith.addf %204, %208 : vector<8x512xf32>
    %210 = vector.extract_strided_slice %170 {offsets = [0, 2], sizes = [8, 1], strides = [1, 1]} : vector<8x3xf32> to vector<8x1xf32>
    %211 = vector.extract_strided_slice %169 {offsets = [0, 6], sizes = [8, 1], strides = [1, 1]} : vector<8x9xf32> to vector<8x1xf32>
    %212 = vector.broadcast %211 : vector<8x1xf32> to vector<8x512xf32>
    %213 = arith.mulf %212, %130 : vector<8x512xf32>
    %214 = vector.broadcast %210 : vector<8x1xf32> to vector<8x512xf32>
    %215 = arith.addf %214, %213 : vector<8x512xf32>
    %216 = vector.extract_strided_slice %169 {offsets = [0, 7], sizes = [8, 1], strides = [1, 1]} : vector<8x9xf32> to vector<8x1xf32>
    %217 = vector.broadcast %216 : vector<8x1xf32> to vector<8x512xf32>
    %218 = arith.mulf %217, %149 : vector<8x512xf32>
    %219 = arith.addf %215, %218 : vector<8x512xf32>
    %220 = vector.extract_strided_slice %169 {offsets = [0, 8], sizes = [8, 1], strides = [1, 1]} : vector<8x9xf32> to vector<8x1xf32>
    %221 = vector.broadcast %220 : vector<8x1xf32> to vector<8x512xf32>
    %222 = arith.mulf %221, %168 : vector<8x512xf32>
    %223 = arith.addf %219, %222 : vector<8x512xf32>
    %224 = vector.extract_strided_slice %171 {offsets = [0, 2], sizes = [8, 1], strides = [1, 1]} : vector<8x3xf32> to vector<8x1xf32>
    %225 = math.tanh %223 : vector<8x512xf32>
    %226 = vector.broadcast %224 : vector<8x1xf32> to vector<8x512xf32>
    %227 = arith.mulf %226, %225 : vector<8x512xf32>
    %228 = arith.addf %223, %227 : vector<8x512xf32>
    %c0_30 = arith.constant 0 : index
    %c0_31 = arith.constant 0 : index
    %229 = vector.load %arg7[%c0_30, %c0_31] : memref<8x3xf32, #tpu.memory_space<vmem>>, vector<8x3xf32>
    %c0_32 = arith.constant 0 : index
    %c0_33 = arith.constant 0 : index
    %230 = vector.load %arg12[%c0_32, %c0_33] : memref<8x1xf32, #tpu.memory_space<vmem>>, vector<8x1xf32>
    %231 = vector.extract_strided_slice %229 {offsets = [0, 0], sizes = [8, 1], strides = [1, 1]} : vector<8x3xf32> to vector<8x1xf32>
    %232 = vector.broadcast %231 : vector<8x1xf32> to vector<8x512xf32>
    %233 = arith.mulf %232, %190 : vector<8x512xf32>
    %234 = vector.broadcast %230 : vector<8x1xf32> to vector<8x512xf32>
    %235 = arith.addf %234, %233 : vector<8x512xf32>
    %236 = vector.extract_strided_slice %229 {offsets = [0, 1], sizes = [8, 1], strides = [1, 1]} : vector<8x3xf32> to vector<8x1xf32>
    %237 = vector.broadcast %236 : vector<8x1xf32> to vector<8x512xf32>
    %238 = arith.mulf %237, %209 : vector<8x512xf32>
    %239 = arith.addf %235, %238 : vector<8x512xf32>
    %240 = vector.extract_strided_slice %229 {offsets = [0, 2], sizes = [8, 1], strides = [1, 1]} : vector<8x3xf32> to vector<8x1xf32>
    %241 = vector.broadcast %240 : vector<8x1xf32> to vector<8x512xf32>
    %242 = arith.mulf %241, %228 : vector<8x512xf32>
    %243 = arith.addf %239, %242 : vector<8x512xf32>
    %244 = vector.extract_strided_slice %243 {offsets = [0, 0], sizes = [4, 512], strides = [1, 1]} : vector<8x512xf32> to vector<4x512xf32>
    %245 = vector.extract_strided_slice %243 {offsets = [4, 0], sizes = [4, 512], strides = [1, 1]} : vector<8x512xf32> to vector<4x512xf32>
    %246 = arith.negf %245 : vector<4x512xf32>
    %247 = math.exp %246 : vector<4x512xf32>
    %cst_34 = arith.constant 1.000000e+00 : f32
    %248 = vector.broadcast %cst_34 : f32 to vector<4x512xf32>
    %249 = arith.addf %248, %247 : vector<4x512xf32>
    %250 = arith.divf %248, %249 : vector<4x512xf32>
    %251 = arith.negf %244 : vector<4x512xf32>
    %252 = math.exp %251 : vector<4x512xf32>
    %cst_35 = arith.constant 1.000000e+00 : f32
    %253 = vector.broadcast %cst_35 : f32 to vector<4x512xf32>
    %254 = arith.addf %253, %252 : vector<4x512xf32>
    %255 = arith.divf %253, %254 : vector<4x512xf32>
    %256 = arith.subf %250, %255 : vector<4x512xf32>
    %cst_36 = arith.constant 9.99999971E-10 : f32
    %257 = vector.broadcast %cst_36 : f32 to vector<4x512xf32>
    %258 = arith.maximumf %256, %257 : vector<4x512xf32>
    %c0_37 = arith.constant 0 : index
    %c0_38 = arith.constant 0 : index
    %259 = vector.load %arg18[%c0_37, %c0_38] : memref<4x512xf32, #tpu.memory_space<vmem>>, vector<4x512xf32>
    tpu.vector_store %arg18[%c0_37, %c0_38], %258 {strides = array<i32>} : memref<4x512xf32, #tpu.memory_space<vmem>>, vector<4x512xf32>,
    return
  }
  func.func @transform_0(%arg0: i32) -> (i32, i32) {
    %c0_i32 = arith.constant 0 : i32
    %c0_i32_0 = arith.constant 0 : i32
    return %c0_i32, %arg0 : i32, i32
  }
  func.func @transform_1(%arg0: i32) -> (i32, i32) {
    %c0_i32 = arith.constant 0 : i32
    %c0_i32_0 = arith.constant 0 : i32
    %c0_i32_1 = arith.constant 0 : i32
    return %c0_i32, %c0_i32_0 : i32, i32
  }
  func.func @transform_2(%arg0: i32) -> (i32, i32) {
    %c0_i32 = arith.constant 0 : i32
    %c0_i32_0 = arith.constant 0 : i32
    %c0_i32_1 = arith.constant 0 : i32
    return %c0_i32, %c0_i32_0 : i32, i32
  }
  func.func @transform_3(%arg0: i32) -> (i32, i32) {
    %c0_i32 = arith.constant 0 : i32
    %c0_i32_0 = arith.constant 0 : i32
    %c0_i32_1 = arith.constant 0 : i32
    return %c0_i32, %c0_i32_0 : i32, i32
  }
  func.func @transform_4(%arg0: i32) -> (i32, i32) {
    %c0_i32 = arith.constant 0 : i32
    %c0_i32_0 = arith.constant 0 : i32
    %c0_i32_1 = arith.constant 0 : i32
    return %c0_i32, %c0_i32_0 : i32, i32
  }
  func.func @transform_5(%arg0: i32) -> (i32, i32) {
    %c0_i32 = arith.constant 0 : i32
    %c0_i32_0 = arith.constant 0 : i32
    %c0_i32_1 = arith.constant 0 : i32
    return %c0_i32, %c0_i32_0 : i32, i32
  }
  func.func @transform_6(%arg0: i32) -> (i32, i32) {
    %c0_i32 = arith.constant 0 : i32
    %c0_i32_0 = arith.constant 0 : i32
    %c0_i32_1 = arith.constant 0 : i32
    return %c0_i32, %c0_i32_0 : i32, i32
  }
  func.func @transform_7(%arg0: i32) -> (i32, i32) {
    %c0_i32 = arith.constant 0 : i32
    %c0_i32_0 = arith.constant 0 : i32
    %c0_i32_1 = arith.constant 0 : i32
    return %c0_i32, %c0_i32_0 : i32, i32
  }
  func.func @transform_8(%arg0: i32) -> (i32, i32) {
    %c0_i32 = arith.constant 0 : i32
    %c0_i32_0 = arith.constant 0 : i32
    %c0_i32_1 = arith.constant 0 : i32
    return %c0_i32, %c0_i32_0 : i32, i32
  }
  func.func @transform_9(%arg0: i32) -> (i32, i32) {
    %c0_i32 = arith.constant 0 : i32
    %c0_i32_0 = arith.constant 0 : i32
    %c0_i32_1 = arith.constant 0 : i32
    return %c0_i32, %c0_i32_0 : i32, i32
  }
  func.func @transform_10(%arg0: i32) -> (i32, i32) {
    %c0_i32 = arith.constant 0 : i32
    %c0_i32_0 = arith.constant 0 : i32
    %c0_i32_1 = arith.constant 0 : i32
    return %c0_i32, %c0_i32_0 : i32, i32
  }
  func.func @transform_11(%arg0: i32) -> (i32, i32) {
    %c0_i32 = arith.constant 0 : i32
    %c0_i32_0 = arith.constant 0 : i32
    %c0_i32_1 = arith.constant 0 : i32
    return %c0_i32, %c0_i32_0 : i32, i32
  }
  func.func @transform_12(%arg0: i32) -> (i32, i32) {
    %c0_i32 = arith.constant 0 : i32
    %c0_i32_0 = arith.constant 0 : i32
    %c0_i32_1 = arith.constant 0 : i32
    return %c0_i32, %c0_i32_0 : i32, i32
  }
  func.func @transform_13(%arg0: i32) -> (i32, i32) {
    %c0_i32 = arith.constant 0 : i32
    %c0_i32_0 = arith.constant 0 : i32
    %c0_i32_1 = arith.constant 0 : i32
    return %c0_i32, %c0_i32_0 : i32, i32
  }
  func.func @transform_14(%arg0: i32) -> (i32, i32) {
    %c0_i32 = arith.constant 0 : i32
    %c0_i32_0 = arith.constant 0 : i32
    %c0_i32_1 = arith.constant 0 : i32
    return %c0_i32, %c0_i32_0 : i32, i32
  }
  func.func @transform_15(%arg0: i32) -> (i32, i32) {
    %c0_i32 = arith.constant 0 : i32
    %c0_i32_0 = arith.constant 0 : i32
    %c0_i32_1 = arith.constant 0 : i32
    return %c0_i32, %c0_i32_0 : i32, i32
  }
  func.func @transform_16(%arg0: i32) -> (i32, i32) {
    %c0_i32 = arith.constant 0 : i32
    %c0_i32_0 = arith.constant 0 : i32
    return %c0_i32, %arg0 : i32, i32
  }
  func.func @transform_17(%arg0: i32) -> (i32, i32) {
    %c0_i32 = arith.constant 0 : i32
    %c0_i32_0 = arith.constant 0 : i32
    return %c0_i32, %arg0 : i32, i32
  }
}

</mosaic_0001>

<llo_original>
// kernel: tpu_custom_call.1
$region0: #{tpu_custom_call.1}
  #allocation0 [shape = 'u32[]', space=smem, size = 0x4, offset = 0x4, fixed_abs, tag = 'smem constant byte address 0x4 - core index']
  #allocation1 [shape = 'u32[72,128]{1,0:T(1,128)}', space=vmem, size = 0x9000, scoped, tag = 'internal scratch']
  %s0 = inlined_call_operand.vmem [shape: f32[4,512], index: 0, kind: input, shape index: {}]
  %s1 = inlined_call_operand.vmem [shape: f32[4,1], index: 1, kind: input, shape index: {}]
  %s2 = inlined_call_operand.vmem [shape: f32[8,3], index: 2, kind: input, shape index: {}]
  %s3 = inlined_call_operand.vmem [shape: f32[8,9], index: 3, kind: input, shape index: {}]
  %s4 = inlined_call_operand.vmem [shape: f32[8,9], index: 4, kind: input, shape index: {}]
  %s5 = inlined_call_operand.vmem [shape: f32[8,9], index: 5, kind: input, shape index: {}]
  %s6 = inlined_call_operand.vmem [shape: f32[8,3], index: 6, kind: input, shape index: {}]
  %s7 = inlined_call_operand.vmem [shape: f32[8,3], index: 7, kind: input, shape index: {}]
  %s8 = inlined_call_operand.vmem [shape: f32[8,3], index: 8, kind: input, shape index: {}]
  %s9 = inlined_call_operand.vmem [shape: f32[8,3], index: 9, kind: input, shape index: {}]
  %s10 = inlined_call_operand.vmem [shape: f32[8,3], index: 10, kind: input, shape index: {}]
  %s11 = inlined_call_operand.vmem [shape: f32[8,1], index: 11, kind: input, shape index: {}]
  %s12 = inlined_call_operand.vmem [shape: f32[8,3], index: 12, kind: input, shape index: {}]
  %s13 = inlined_call_operand.vmem [shape: f32[8,3], index: 13, kind: input, shape index: {}]
  %s14 = inlined_call_operand.vmem [shape: f32[8,3], index: 14, kind: input, shape index: {}]
  %s15 = inlined_call_operand.vmem [shape: f32[8,3], index: 15, kind: input, shape index: {}]
  %s16 = inlined_call_operand.hbm [shape: f32[4,512], index: 16, kind: output, shape index: {0}]
  %s17 = inlined_call_operand.hbm [shape: f32[4,512], index: 17, kind: output, shape index: {1}]
  %18 = xla_tuple %s16, %s17
  %s19 = sld [smem:[#allocation0]]
  $region82: #{tpu_custom_call.1} parent=0
    _
  %s21 = ssub.s32 1, %s19
  %s22 = scalar_select 0, %s21, %s19
  $region1: #{tpu_custom_call.1} parent=0
    #allocation2 [shape = 'u8[8192]{0}', space=vmem, size = 0x2000, scoped, tag = 'output window, operand 0, single buffered']
    #allocation3 [shape = 's32[1]{0}', space=sflag, size = 0x4, scoped, tag = 'scoped memory for tpu_custom_call.1']
    #allocation4 [shape = 'u8[8192]{0}', space=vmem, size = 0x2000, scoped, tag = 'output window, operand 1, single buffered']
    #allocation5 [shape = 's32[1]{0}', space=sflag, size = 0x4, scoped, tag = 'scoped memory for tpu_custom_call.1']
    %23 = vsyncpa [#allocation3], 0
    %24 = vsyncpa [#allocation5], 0
    // Predicated region
    $region2: #{tpu_custom_call.1} parent=1 // pred_check
      _
    $region3: #{tpu_custom_call.1} parent=1 // pred_check_branch
      %26 = sbr.rel (0) target = $region5
    $region4: #{tpu_custom_call.1} parent=1 // pred_region
      _
    $region5: #{tpu_custom_call.1} parent=1 // pred_fallthru
      _
    // Predicated region
    $region6: #{tpu_custom_call.1} parent=1 // pred_check
      _
    $region7: #{tpu_custom_call.1} parent=1 // pred_check_branch
      %28 = sbr.rel (0) target = $region9
    $region8: #{tpu_custom_call.1} parent=1 // pred_region
      _
    $region9: #{tpu_custom_call.1} parent=1 // pred_fallthru
      _
    // Predicated region
    $region10: #{tpu_custom_call.1} parent=1 // pred_check
      _
    $region11: #{tpu_custom_call.1} parent=1 // pred_check_branch
      %30 = sbr.rel (0) target = $region13
    $region12: #{tpu_custom_call.1} parent=1 // pred_region
      _
    $region13: #{tpu_custom_call.1} parent=1 // pred_fallthru
      _
    // Predicated region
    $region14: #{tpu_custom_call.1} parent=1 // pred_check
      _
    $region15: #{tpu_custom_call.1} parent=1 // pred_check_branch
      %32 = sbr.rel (0) target = $region17
    $region16: #{tpu_custom_call.1} parent=1 // pred_region
      _
    $region17: #{tpu_custom_call.1} parent=1 // pred_fallthru
      _
    // Predicated region
    $region18: #{tpu_custom_call.1} parent=1 // pred_check
      _
    $region19: #{tpu_custom_call.1} parent=1 // pred_check_branch
      %34 = sbr.rel (0) target = $region21
    $region20: #{tpu_custom_call.1} parent=1 // pred_region
      _
    $region21: #{tpu_custom_call.1} parent=1 // pred_fallthru
      _
    // Predicated region
    $region22: #{tpu_custom_call.1} parent=1 // pred_check
      _
    $region23: #{tpu_custom_call.1} parent=1 // pred_check_branch
      %36 = sbr.rel (0) target = $region25
    $region24: #{tpu_custom_call.1} parent=1 // pred_region
      _
    $region25: #{tpu_custom_call.1} parent=1 // pred_fallthru
      _
    // Predicated region
    $region26: #{tpu_custom_call.1} parent=1 // pred_check
      _
    $region27: #{tpu_custom_call.1} parent=1 // pred_check_branch
      %38 = sbr.rel (0) target = $region29
    $region28: #{tpu_custom_call.1} parent=1 // pred_region
      _
    $region29: #{tpu_custom_call.1} parent=1 // pred_fallthru
      _
    // Predicated region
    $region30: #{tpu_custom_call.1} parent=1 // pred_check
      _
    $region31: #{tpu_custom_call.1} parent=1 // pred_check_branch
      %40 = sbr.rel (0) target = $region33
    $region32: #{tpu_custom_call.1} parent=1 // pred_region
      _
    $region33: #{tpu_custom_call.1} parent=1 // pred_fallthru
      _
    // Predicated region
    $region34: #{tpu_custom_call.1} parent=1 // pred_check
      _
    $region35: #{tpu_custom_call.1} parent=1 // pred_check_branch
      %42 = sbr.rel (0) target = $region37
    $region36: #{tpu_custom_call.1} parent=1 // pred_region
      _
    $region37: #{tpu_custom_call.1} parent=1 // pred_fallthru
      _
    // Predicated region
    $region38: #{tpu_custom_call.1} parent=1 // pred_check
      _
    $region39: #{tpu_custom_call.1} parent=1 // pred_check_branch
      %44 = sbr.rel (0) target = $region41
    $region40: #{tpu_custom_call.1} parent=1 // pred_region
      _
    $region41: #{tpu_custom_call.1} parent=1 // pred_fallthru
      _
    // Predicated region
    $region42: #{tpu_custom_call.1} parent=1 // pred_check
      _
    $region43: #{tpu_custom_call.1} parent=1 // pred_check_branch
      %46 = sbr.rel (0) target = $region45
    $region44: #{tpu_custom_call.1} parent=1 // pred_region
      _
    $region45: #{tpu_custom_call.1} parent=1 // pred_fallthru
      _
    // Predicated region
    $region46: #{tpu_custom_call.1} parent=1 // pred_check
      _
    $region47: #{tpu_custom_call.1} parent=1 // pred_check_branch
      %48 = sbr.rel (0) target = $region49
    $region48: #{tpu_custom_call.1} parent=1 // pred_region
      _
    $region49: #{tpu_custom_call.1} parent=1 // pred_fallthru
      _
    // Predicated region
    $region50: #{tpu_custom_call.1} parent=1 // pred_check
      _
    $region51: #{tpu_custom_call.1} parent=1 // pred_check_branch
      %50 = sbr.rel (0) target = $region53
    $region52: #{tpu_custom_call.1} parent=1 // pred_region
      _
    $region53: #{tpu_custom_call.1} parent=1 // pred_fallthru
      _
    // Predicated region
    $region54: #{tpu_custom_call.1} parent=1 // pred_check
      _
    $region55: #{tpu_custom_call.1} parent=1 // pred_check_branch
      %52 = sbr.rel (0) target = $region57
    $region56: #{tpu_custom_call.1} parent=1 // pred_region
      _
    $region57: #{tpu_custom_call.1} parent=1 // pred_fallthru
      _
    // Predicated region
    $region58: #{tpu_custom_call.1} parent=1 // pred_check
      _
    $region59: #{tpu_custom_call.1} parent=1 // pred_check_branch
      %54 = sbr.rel (0) target = $region61
    $region60: #{tpu_custom_call.1} parent=1 // pred_region
      _
    $region61: #{tpu_custom_call.1} parent=1 // pred_fallthru
      _
    // Predicated region
    $region62: #{tpu_custom_call.1} parent=1 // pred_check
      _
    $region63: #{tpu_custom_call.1} parent=1 // pred_check_branch
      %56 = sbr.rel (0) target = $region65
    $region64: #{tpu_custom_call.1} parent=1 // pred_region
      _
    $region65: #{tpu_custom_call.1} parent=1 // pred_fallthru
      _
    %v57 = vld [vmem:[%s0] sm:$0xff]
    %v58 = vld [vmem:[%s0 + $0x8] sm:$0xff]
    %v59 = vld [vmem:[%s1] sm:$0xf]
    %61 = vset.pattern.permute.xlu0 0
    %62 = vperm.xlu0 %61, %v59
    %v63 = vpop.permute.xlu0 %62
    %v65 = vunpack.c.l.s4 839922192
    %v66 = vunpack.c.0.s8 %v65
    %v67 = vperm.slane %v63, %v66
    %v69 = vsub.f32 %v57, %v67
    %v70 = vsub.f32 %v58, %v67
    %v71 = vround.ne.pseudo %v69
    %v72 = vround.ne.pseudo %v70
    %v73 = vadd.f32 %v71, %v67
    %v74 = vadd.f32 %v72, %v67
    %75 = vst [vmem:[#allocation2] sm:$0xff] %v73
    %76 = vst [vmem:[#allocation2 + $0x8] sm:$0xff] %v74
    %v77 = vsub.f32 %v73, 0.5
    %v78 = vsub.f32 %v74, 0.5
    %v79 = vadd.f32 %v73, 0.5
    %v80 = vadd.f32 %v74, 0.5
    %83 = vst [vmem:[#allocation1] ss:$2 sm:$0xff] %v77
    %s84 = scalar_lea.vmem [#allocation1], 16
    %85 = vst [vmem:[%s84] ss:$2 sm:$0xff] %v78
    %v86 = vld.sshfl [vmem:[#allocation1] sm:$0xff pattern:$0x75316420]
    %v87 = vld.sshfl [vmem:[#allocation1 + $0x8] sm:$0xff pattern:$0x75316420]
    %v88 = vld.sshfl [vmem:[#allocation1 + $0x10] sm:$0xff pattern:$0x75316420]
    %v89 = vld.sshfl [vmem:[#allocation1 + $0x18] sm:$0xff pattern:$0x75316420]
    %s96 = scalar_lea.vmem [#allocation1], 1
    %97 = vst [vmem:[%s96] ss:$2 sm:$0xff] %v79
    %s98 = scalar_lea.vmem [#allocation1], 17
    %99 = vst [vmem:[%s98] ss:$2 sm:$0xff] %v80
    %v100 = vld.sshfl [vmem:[#allocation1] sm:$0xff pattern:$0x75316420]
    %v101 = vld.sshfl [vmem:[#allocation1 + $0x8] sm:$0xff pattern:$0x75316420]
    %v102 = vld.sshfl [vmem:[#allocation1 + $0x10] sm:$0xff pattern:$0x75316420]
    %v103 = vld.sshfl [vmem:[#allocation1 + $0x18] sm:$0xff pattern:$0x75316420]
    %vm108 = vcmask 1043456
    %v109 = vsel %vm108, %v86, %v100
    %v110 = vsel %vm108, %v87, %v101
    %v111 = vsel %vm108, %v88, %v102
    %v112 = vsel %vm108, %v89, %v103
    %v113 = vld [vmem:[%s2] sm:$0xff]
    %v114 = vld [vmem:[%s7] sm:$0xff]
    %v115 = vld [vmem:[%s12] sm:$0xff]
    %117 = vset.pattern.permute.xlu0 0
    %118 = vperm.xlu0 %117, %v113
    %v119 = vpop.permute.xlu0 %118
    %v121 = vmul.f32 %v119, %v109
    %v122 = vmul.f32 %v119, %v110
    %v123 = vmul.f32 %v119, %v111
    %v124 = vmul.f32 %v119, %v112
    %126 = vset.pattern.permute.xlu0 0
    %127 = vperm.xlu0 %126, %v114
    %v128 = vpop.permute.xlu0 %127
    %v130 = vadd.f32 %v128, %v121
    %v131 = vadd.f32 %v128, %v122
    %v132 = vadd.f32 %v128, %v123
    %v133 = vadd.f32 %v128, %v124
    %v134 = vtanh.pop %v130
    %v135 = vtanh.pop %v131
    %v136 = vtanh.pop %v132
    %v137 = vtanh.pop %v133
    %139 = vset.pattern.permute.xlu0 0
    %140 = vperm.xlu0 %139, %v115
    %v141 = vpop.permute.xlu0 %140
    %v143 = vmul.f32 %v141, %v134
    %v144 = vmul.f32 %v141, %v135
    %v145 = vmul.f32 %v141, %v136
    %v146 = vmul.f32 %v141, %v137
    %v147 = vadd.f32 %v130, %v143
    %v148 = vadd.f32 %v131, %v144
    %v149 = vadd.f32 %v132, %v145
    %v150 = vadd.f32 %v133, %v146
    %151 = vset.pattern.permute.xlu0 1
    %152 = vperm.xlu0 %151, %v113
    %v153 = vpop.permute.xlu0 %152
    %v155 = vmul.f32 %v153, %v109
    %v156 = vmul.f32 %v153, %v110
    %v157 = vmul.f32 %v153, %v111
    %v158 = vmul.f32 %v153, %v112
    %159 = vset.pattern.permute.xlu0 1
    %160 = vperm.xlu0 %159, %v114
    %v161 = vpop.permute.xlu0 %160
    %v163 = vadd.f32 %v161, %v155
    %v164 = vadd.f32 %v161, %v156
    %v165 = vadd.f32 %v161, %v157
    %v166 = vadd.f32 %v161, %v158
    %v167 = vtanh.pop %v163
    %v168 = vtanh.pop %v164
    %v169 = vtanh.pop %v165
    %v170 = vtanh.pop %v166
    %171 = vset.pattern.permute.xlu0 1
    %172 = vperm.xlu0 %171, %v115
    %v173 = vpop.permute.xlu0 %172
    %v175 = vmul.f32 %v173, %v167
    %v176 = vmul.f32 %v173, %v168
    %v177 = vmul.f32 %v173, %v169
    %v178 = vmul.f32 %v173, %v170
    %v179 = vadd.f32 %v163, %v175
    %v180 = vadd.f32 %v164, %v176
    %v181 = vadd.f32 %v165, %v177
    %v182 = vadd.f32 %v166, %v178
    %183 = vset.pattern.permute.xlu0 2
    %184 = vperm.xlu0 %183, %v113
    %v185 = vpop.permute.xlu0 %184
    %v187 = vmul.f32 %v185, %v109
    %v188 = vmul.f32 %v185, %v110
    %v189 = vmul.f32 %v185, %v111
    %v190 = vmul.f32 %v185, %v112
    %191 = vset.pattern.permute.xlu0 2
    %192 = vperm.xlu0 %191, %v114
    %v193 = vpop.permute.xlu0 %192
    %v195 = vadd.f32 %v193, %v187
    %v196 = vadd.f32 %v193, %v188
    %v197 = vadd.f32 %v193, %v189
    %v198 = vadd.f32 %v193, %v190
    %v199 = vtanh.pop %v195
    %v200 = vtanh.pop %v196
    %v201 = vtanh.pop %v197
    %v202 = vtanh.pop %v198
    %203 = vset.pattern.permute.xlu0 2
    %204 = vperm.xlu0 %203, %v115
    %v205 = vpop.permute.xlu0 %204
    %v207 = vmul.f32 %v205, %v199
    %v208 = vmul.f32 %v205, %v200
    %v209 = vmul.f32 %v205, %v201
    %v210 = vmul.f32 %v205, %v202
    %v211 = vadd.f32 %v195, %v207
    %v212 = vadd.f32 %v196, %v208
    %v213 = vadd.f32 %v197, %v209
    %v214 = vadd.f32 %v198, %v210
    %v215 = vld [vmem:[%s3] sm:$0xff]
    %v216 = vld [vmem:[%s8] sm:$0xff]
    %v217 = vld [vmem:[%s13] sm:$0xff]
    %219 = vset.pattern.permute.xlu0 0
    %220 = vperm.xlu0 %219, %v215
    %v221 = vpop.permute.xlu0 %220
    %v223 = vmul.f32 %v221, %v147
    %v224 = vmul.f32 %v221, %v148
    %v225 = vmul.f32 %v221, %v149
    %v226 = vmul.f32 %v221, %v150
    %228 = vset.pattern.permute.xlu0 0
    %229 = vperm.xlu0 %228, %v216
    %v230 = vpop.permute.xlu0 %229
    %v232 = vadd.f32 %v230, %v223
    %v233 = vadd.f32 %v230, %v224
    %v234 = vadd.f32 %v230, %v225
    %v235 = vadd.f32 %v230, %v226
    %236 = vset.pattern.permute.xlu0 1
    %237 = vperm.xlu0 %236, %v215
    %v238 = vpop.permute.xlu0 %237
    %v240 = vmul.f32 %v238, %v179
    %v241 = vmul.f32 %v238, %v180
    %v242 = vmul.f32 %v238, %v181
    %v243 = vmul.f32 %v238, %v182
    %v244 = vadd.f32 %v232, %v240
    %v245 = vadd.f32 %v233, %v241
    %v246 = vadd.f32 %v234, %v242
    %v247 = vadd.f32 %v235, %v243
    %248 = vset.pattern.permute.xlu0 2
    %249 = vperm.xlu0 %248, %v215
    %v250 = vpop.permute.xlu0 %249
    %v252 = vmul.f32 %v250, %v211
    %v253 = vmul.f32 %v250, %v212
    %v254 = vmul.f32 %v250, %v213
    %v255 = vmul.f32 %v250, %v214
    %v256 = vadd.f32 %v244, %v252
    %v257 = vadd.f32 %v245, %v253
    %v258 = vadd.f32 %v246, %v254
    %v259 = vadd.f32 %v247, %v255
    %v260 = vtanh.pop %v256
    %v261 = vtanh.pop %v257
    %v262 = vtanh.pop %v258
    %v263 = vtanh.pop %v259
    %265 = vset.pattern.permute.xlu0 0
    %266 = vperm.xlu0 %265, %v217
    %v267 = vpop.permute.xlu0 %266
    %v269 = vmul.f32 %v267, %v260
    %v270 = vmul.f32 %v267, %v261
    %v271 = vmul.f32 %v267, %v262
    %v272 = vmul.f32 %v267, %v263
    %v273 = vadd.f32 %v256, %v269
    %v274 = vadd.f32 %v257, %v270
    %v275 = vadd.f32 %v258, %v271
    %v276 = vadd.f32 %v259, %v272
    %277 = vset.pattern.permute.xlu0 3
    %278 = vperm.xlu0 %277, %v215
    %v279 = vpop.permute.xlu0 %278
    %v281 = vmul.f32 %v279, %v147
    %v282 = vmul.f32 %v279, %v148
    %v283 = vmul.f32 %v279, %v149
    %v284 = vmul.f32 %v279, %v150
    %285 = vset.pattern.permute.xlu0 1
    %286 = vperm.xlu0 %285, %v216
    %v287 = vpop.permute.xlu0 %286
    %v289 = vadd.f32 %v287, %v281
    %v290 = vadd.f32 %v287, %v282
    %v291 = vadd.f32 %v287, %v283
    %v292 = vadd.f32 %v287, %v284
    %293 = vset.pattern.permute.xlu0 4
    %294 = vperm.xlu0 %293, %v215
    %v295 = vpop.permute.xlu0 %294
    %v297 = vmul.f32 %v295, %v179
    %v298 = vmul.f32 %v295, %v180
    %v299 = vmul.f32 %v295, %v181
    %v300 = vmul.f32 %v295, %v182
    %v301 = vadd.f32 %v289, %v297
    %v302 = vadd.f32 %v290, %v298
    %v303 = vadd.f32 %v291, %v299
    %v304 = vadd.f32 %v292, %v300
    %305 = vset.pattern.permute.xlu0 5
    %306 = vperm.xlu0 %305, %v215
    %v307 = vpop.permute.xlu0 %306
    %v309 = vmul.f32 %v307, %v211
    %v310 = vmul.f32 %v307, %v212
    %v311 = vmul.f32 %v307, %v213
    %v312 = vmul.f32 %v307, %v214
    %v313 = vadd.f32 %v301, %v309
    %v314 = vadd.f32 %v302, %v310
    %v315 = vadd.f32 %v303, %v311
    %v316 = vadd.f32 %v304, %v312
    %v317 = vtanh.pop %v313
    %v318 = vtanh.pop %v314
    %v319 = vtanh.pop %v315
    %v320 = vtanh.pop %v316
    %321 = vset.pattern.permute.xlu0 1
    %322 = vperm.xlu0 %321, %v217
    %v323 = vpop.permute.xlu0 %322
    %v325 = vmul.f32 %v323, %v317
    %v326 = vmul.f32 %v323, %v318
    %v327 = vmul.f32 %v323, %v319
    %v328 = vmul.f32 %v323, %v320
    %v329 = vadd.f32 %v313, %v325
    %v330 = vadd.f32 %v314, %v326
    %v331 = vadd.f32 %v315, %v327
    %v332 = vadd.f32 %v316, %v328
    %333 = vset.pattern.permute.xlu0 6
    %334 = vperm.xlu0 %333, %v215
    %v335 = vpop.permute.xlu0 %334
    %v337 = vmul.f32 %v335, %v147
    %v338 = vmul.f32 %v335, %v148
    %v339 = vmul.f32 %v335, %v149
    %v340 = vmul.f32 %v335, %v150
    %341 = vset.pattern.permute.xlu0 2
    %342 = vperm.xlu0 %341, %v216
    %v343 = vpop.permute.xlu0 %342
    %v345 = vadd.f32 %v343, %v337
    %v346 = vadd.f32 %v343, %v338
    %v347 = vadd.f32 %v343, %v339
    %v348 = vadd.f32 %v343, %v340
    %349 = vset.pattern.permute.xlu0 7
    %350 = vperm.xlu0 %349, %v215
    %v351 = vpop.permute.xlu0 %350
    %v353 = vmul.f32 %v351, %v179
    %v354 = vmul.f32 %v351, %v180
    %v355 = vmul.f32 %v351, %v181
    %v356 = vmul.f32 %v351, %v182
    %v357 = vadd.f32 %v345, %v353
    %v358 = vadd.f32 %v346, %v354
    %v359 = vadd.f32 %v347, %v355
    %v360 = vadd.f32 %v348, %v356
    %361 = vset.pattern.permute.xlu0 8
    %362 = vperm.xlu0 %361, %v215
    %v363 = vpop.permute.xlu0 %362
    %v365 = vmul.f32 %v363, %v211
    %v366 = vmul.f32 %v363, %v212
    %v367 = vmul.f32 %v363, %v213
    %v368 = vmul.f32 %v363, %v214
    %v369 = vadd.f32 %v357, %v365
    %v370 = vadd.f32 %v358, %v366
    %v371 = vadd.f32 %v359, %v367
    %v372 = vadd.f32 %v360, %v368
    %v373 = vtanh.pop %v369
    %v374 = vtanh.pop %v370
    %v375 = vtanh.pop %v371
    %v376 = vtanh.pop %v372
    %377 = vset.pattern.permute.xlu0 2
    %378 = vperm.xlu0 %377, %v217
    %v379 = vpop.permute.xlu0 %378
    %v381 = vmul.f32 %v379, %v373
    %v382 = vmul.f32 %v379, %v374
    %v383 = vmul.f32 %v379, %v375
    %v384 = vmul.f32 %v379, %v376
    %v385 = vadd.f32 %v369, %v381
    %v386 = vadd.f32 %v370, %v382
    %v387 = vadd.f32 %v371, %v383
    %v388 = vadd.f32 %v372, %v384
    %v389 = vld [vmem:[%s4] sm:$0xff]
    %v390 = vld [vmem:[%s9] sm:$0xff]
    %v391 = vld [vmem:[%s14] sm:$0xff]
    %393 = vset.pattern.permute.xlu0 0
    %394 = vperm.xlu0 %393, %v389
    %v395 = vpop.permute.xlu0 %394
    %v397 = vmul.f32 %v395, %v273
    %v398 = vmul.f32 %v395, %v274
    %v399 = vmul.f32 %v395, %v275
    %v400 = vmul.f32 %v395, %v276
    %402 = vset.pattern.permute.xlu0 0
    %403 = vperm.xlu0 %402, %v390
    %v404 = vpop.permute.xlu0 %403
    %v406 = vadd.f32 %v404, %v397
    %v407 = vadd.f32 %v404, %v398
    %v408 = vadd.f32 %v404, %v399
    %v409 = vadd.f32 %v404, %v400
    %410 = vset.pattern.permute.xlu0 1
    %411 = vperm.xlu0 %410, %v389
    %v412 = vpop.permute.xlu0 %411
    %v414 = vmul.f32 %v412, %v329
    %v415 = vmul.f32 %v412, %v330
    %v416 = vmul.f32 %v412, %v331
    %v417 = vmul.f32 %v412, %v332
    %v418 = vadd.f32 %v406, %v414
    %v419 = vadd.f32 %v407, %v415
    %v420 = vadd.f32 %v408, %v416
    %v421 = vadd.f32 %v409, %v417
    %422 = vset.pattern.permute.xlu0 2
    %423 = vperm.xlu0 %422, %v389
    %v424 = vpop.permute.xlu0 %423
    %v426 = vmul.f32 %v424, %v385
    %v427 = vmul.f32 %v424, %v386
    %v428 = vmul.f32 %v424, %v387
    %v429 = vmul.f32 %v424, %v388
    %v430 = vadd.f32 %v418, %v426
    %v431 = vadd.f32 %v419, %v427
    %v432 = vadd.f32 %v420, %v428
    %v433 = vadd.f32 %v421, %v429
    %v434 = vtanh.pop %v430
    %v435 = vtanh.pop %v431
    %v436 = vtanh.pop %v432
    %v437 = vtanh.pop %v433
    %439 = vset.pattern.permute.xlu0 0
    %440 = vperm.xlu0 %439, %v391
    %v441 = vpop.permute.xlu0 %440
    %v443 = vmul.f32 %v441, %v434
    %v444 = vmul.f32 %v441, %v435
    %v445 = vmul.f32 %v441, %v436
    %v446 = vmul.f32 %v441, %v437
    %v447 = vadd.f32 %v430, %v443
    %v448 = vadd.f32 %v431, %v444
    %v449 = vadd.f32 %v432, %v445
    %v450 = vadd.f32 %v433, %v446
    %451 = vset.pattern.permute.xlu0 3
    %452 = vperm.xlu0 %451, %v389
    %v453 = vpop.permute.xlu0 %452
    %v455 = vmul.f32 %v453, %v273
    %v456 = vmul.f32 %v453, %v274
    %v457 = vmul.f32 %v453, %v275
    %v458 = vmul.f32 %v453, %v276
    %459 = vset.pattern.permute.xlu0 1
    %460 = vperm.xlu0 %459, %v390
    %v461 = vpop.permute.xlu0 %460
    %v463 = vadd.f32 %v461, %v455
    %v464 = vadd.f32 %v461, %v456
    %v465 = vadd.f32 %v461, %v457
    %v466 = vadd.f32 %v461, %v458
    %467 = vset.pattern.permute.xlu0 4
    %468 = vperm.xlu0 %467, %v389
    %v469 = vpop.permute.xlu0 %468
    %v471 = vmul.f32 %v469, %v329
    %v472 = vmul.f32 %v469, %v330
    %v473 = vmul.f32 %v469, %v331
    %v474 = vmul.f32 %v469, %v332
    %v475 = vadd.f32 %v463, %v471
    %v476 = vadd.f32 %v464, %v472
    %v477 = vadd.f32 %v465, %v473
    %v478 = vadd.f32 %v466, %v474
    %479 = vset.pattern.permute.xlu0 5
    %480 = vperm.xlu0 %479, %v389
    %v481 = vpop.permute.xlu0 %480
    %v483 = vmul.f32 %v481, %v385
    %v484 = vmul.f32 %v481, %v386
    %v485 = vmul.f32 %v481, %v387
    %v486 = vmul.f32 %v481, %v388
    %v487 = vadd.f32 %v475, %v483
    %v488 = vadd.f32 %v476, %v484
    %v489 = vadd.f32 %v477, %v485
    %v490 = vadd.f32 %v478, %v486
    %v491 = vtanh.pop %v487
    %v492 = vtanh.pop %v488
    %v493 = vtanh.pop %v489
    %v494 = vtanh.pop %v490
    %495 = vset.pattern.permute.xlu0 1
    %496 = vperm.xlu0 %495, %v391
    %v497 = vpop.permute.xlu0 %496
    %v499 = vmul.f32 %v497, %v491
    %v500 = vmul.f32 %v497, %v492
    %v501 = vmul.f32 %v497, %v493
    %v502 = vmul.f32 %v497, %v494
    %v503 = vadd.f32 %v487, %v499
    %v504 = vadd.f32 %v488, %v500
    %v505 = vadd.f32 %v489, %v501
    %v506 = vadd.f32 %v490, %v502
    %507 = vset.pattern.permute.xlu0 6
    %508 = vperm.xlu0 %507, %v389
    %v509 = vpop.permute.xlu0 %508
    %v511 = vmul.f32 %v509, %v273
    %v512 = vmul.f32 %v509, %v274
    %v513 = vmul.f32 %v509, %v275
    %v514 = vmul.f32 %v509, %v276
    %515 = vset.pattern.permute.xlu0 2
    %516 = vperm.xlu0 %515, %v390
    %v517 = vpop.permute.xlu0 %516
    %v519 = vadd.f32 %v517, %v511
    %v520 = vadd.f32 %v517, %v512
    %v521 = vadd.f32 %v517, %v513
    %v522 = vadd.f32 %v517, %v514
    %523 = vset.pattern.permute.xlu0 7
    %524 = vperm.xlu0 %523, %v389
    %v525 = vpop.permute.xlu0 %524
    %v527 = vmul.f32 %v525, %v329
    %v528 = vmul.f32 %v525, %v330
    %v529 = vmul.f32 %v525, %v331
    %v530 = vmul.f32 %v525, %v332
    %v531 = vadd.f32 %v519, %v527
    %v532 = vadd.f32 %v520, %v528
    %v533 = vadd.f32 %v521, %v529
    %v534 = vadd.f32 %v522, %v530
    %535 = vset.pattern.permute.xlu0 8
    %536 = vperm.xlu0 %535, %v389
    %v537 = vpop.permute.xlu0 %536
    %v539 = vmul.f32 %v537, %v385
    %v540 = vmul.f32 %v537, %v386
    %v541 = vmul.f32 %v537, %v387
    %v542 = vmul.f32 %v537, %v388
    %v543 = vadd.f32 %v531, %v539
    %v544 = vadd.f32 %v532, %v540
    %v545 = vadd.f32 %v533, %v541
    %v546 = vadd.f32 %v534, %v542
    %v547 = vtanh.pop %v543
    %v548 = vtanh.pop %v544
    %v549 = vtanh.pop %v545
    %v550 = vtanh.pop %v546
    %551 = vset.pattern.permute.xlu0 2
    %552 = vperm.xlu0 %551, %v391
    %v553 = vpop.permute.xlu0 %552
    %v555 = vmul.f32 %v553, %v547
    %v556 = vmul.f32 %v553, %v548
    %v557 = vmul.f32 %v553, %v549
    %v558 = vmul.f32 %v553, %v550
    %v559 = vadd.f32 %v543, %v555
    %v560 = vadd.f32 %v544, %v556
    %v561 = vadd.f32 %v545, %v557
    %v562 = vadd.f32 %v546, %v558
    %v563 = vld [vmem:[%s5] sm:$0xff]
    %v564 = vld [vmem:[%s10] sm:$0xff]
    %v565 = vld [vmem:[%s15] sm:$0xff]
    %567 = vset.pattern.permute.xlu0 0
    %568 = vperm.xlu0 %567, %v563
    %v569 = vpop.permute.xlu0 %568
    %v571 = vmul.f32 %v569, %v447
    %v572 = vmul.f32 %v569, %v448
    %v573 = vmul.f32 %v569, %v449
    %v574 = vmul.f32 %v569, %v450
    %576 = vset.pattern.permute.xlu0 0
    %577 = vperm.xlu0 %576, %v564
    %v578 = vpop.permute.xlu0 %577
    %v580 = vadd.f32 %v578, %v571
    %v581 = vadd.f32 %v578, %v572
    %v582 = vadd.f32 %v578, %v573
    %v583 = vadd.f32 %v578, %v574
    %584 = vset.pattern.permute.xlu0 1
    %585 = vperm.xlu0 %584, %v563
    %v586 = vpop.permute.xlu0 %585
    %v588 = vmul.f32 %v586, %v503
    %v589 = vmul.f32 %v586, %v504
    %v590 = vmul.f32 %v586, %v505
    %v591 = vmul.f32 %v586, %v506
    %v592 = vadd.f32 %v580, %v588
    %v593 = vadd.f32 %v581, %v589
    %v594 = vadd.f32 %v582, %v590
    %v595 = vadd.f32 %v583, %v591
    %596 = vset.pattern.permute.xlu0 2
    %597 = vperm.xlu0 %596, %v563
    %v598 = vpop.permute.xlu0 %597
    %v600 = vmul.f32 %v598, %v559
    %v601 = vmul.f32 %v598, %v560
    %v602 = vmul.f32 %v598, %v561
    %v603 = vmul.f32 %v598, %v562
    %v604 = vadd.f32 %v592, %v600
    %v605 = vadd.f32 %v593, %v601
    %v606 = vadd.f32 %v594, %v602
    %v607 = vadd.f32 %v595, %v603
    %v608 = vtanh.pop %v604
    %v609 = vtanh.pop %v605
    %v610 = vtanh.pop %v606
    %v611 = vtanh.pop %v607
    %613 = vset.pattern.permute.xlu0 0
    %614 = vperm.xlu0 %613, %v565
    %v615 = vpop.permute.xlu0 %614
    %v617 = vmul.f32 %v615, %v608
    %v618 = vmul.f32 %v615, %v609
    %v619 = vmul.f32 %v615, %v610
    %v620 = vmul.f32 %v615, %v611
    %v621 = vadd.f32 %v604, %v617
    %v622 = vadd.f32 %v605, %v618
    %v623 = vadd.f32 %v606, %v619
    %v624 = vadd.f32 %v607, %v620
    %625 = vset.pattern.permute.xlu0 3
    %626 = vperm.xlu0 %625, %v563
    %v627 = vpop.permute.xlu0 %626
    %v629 = vmul.f32 %v627, %v447
    %v630 = vmul.f32 %v627, %v448
    %v631 = vmul.f32 %v627, %v449
    %v632 = vmul.f32 %v627, %v450
    %633 = vset.pattern.permute.xlu0 1
    %634 = vperm.xlu0 %633, %v564
    %v635 = vpop.permute.xlu0 %634
    %v637 = vadd.f32 %v635, %v629
    %v638 = vadd.f32 %v635, %v630
    %v639 = vadd.f32 %v635, %v631
    %v640 = vadd.f32 %v635, %v632
    %641 = vset.pattern.permute.xlu0 4
    %642 = vperm.xlu0 %641, %v563
    %v643 = vpop.permute.xlu0 %642
    %v645 = vmul.f32 %v643, %v503
    %v646 = vmul.f32 %v643, %v504
    %v647 = vmul.f32 %v643, %v505
    %v648 = vmul.f32 %v643, %v506
    %v649 = vadd.f32 %v637, %v645
    %v650 = vadd.f32 %v638, %v646
    %v651 = vadd.f32 %v639, %v647
    %v652 = vadd.f32 %v640, %v648
    %653 = vset.pattern.permute.xlu0 5
    %654 = vperm.xlu0 %653, %v563
    %v655 = vpop.permute.xlu0 %654
    %v657 = vmul.f32 %v655, %v559
    %v658 = vmul.f32 %v655, %v560
    %v659 = vmul.f32 %v655, %v561
    %v660 = vmul.f32 %v655, %v562
    %v661 = vadd.f32 %v649, %v657
    %v662 = vadd.f32 %v650, %v658
    %v663 = vadd.f32 %v651, %v659
    %v664 = vadd.f32 %v652, %v660
    %v665 = vtanh.pop %v661
    %v666 = vtanh.pop %v662
    %v667 = vtanh.pop %v663
    %v668 = vtanh.pop %v664
    %669 = vset.pattern.permute.xlu0 1
    %670 = vperm.xlu0 %669, %v565
    %v671 = vpop.permute.xlu0 %670
    %v673 = vmul.f32 %v671, %v665
    %v674 = vmul.f32 %v671, %v666
    %v675 = vmul.f32 %v671, %v667
    %v676 = vmul.f32 %v671, %v668
    %v677 = vadd.f32 %v661, %v673
    %v678 = vadd.f32 %v662, %v674
    %v679 = vadd.f32 %v663, %v675
    %v680 = vadd.f32 %v664, %v676
    %681 = vset.pattern.permute.xlu0 6
    %682 = vperm.xlu0 %681, %v563
    %v683 = vpop.permute.xlu0 %682
    %v685 = vmul.f32 %v683, %v447
    %v686 = vmul.f32 %v683, %v448
    %v687 = vmul.f32 %v683, %v449
    %v688 = vmul.f32 %v683, %v450
    %689 = vset.pattern.permute.xlu0 2
    %690 = vperm.xlu0 %689, %v564
    %v691 = vpop.permute.xlu0 %690
    %v693 = vadd.f32 %v691, %v685
    %v694 = vadd.f32 %v691, %v686
    %v695 = vadd.f32 %v691, %v687
    %v696 = vadd.f32 %v691, %v688
    %697 = vset.pattern.permute.xlu0 7
    %698 = vperm.xlu0 %697, %v563
    %v699 = vpop.permute.xlu0 %698
    %v701 = vmul.f32 %v699, %v503
    %v702 = vmul.f32 %v699, %v504
    %v703 = vmul.f32 %v699, %v505
    %v704 = vmul.f32 %v699, %v506
    %v705 = vadd.f32 %v693, %v701
    %v706 = vadd.f32 %v694, %v702
    %v707 = vadd.f32 %v695, %v703
    %v708 = vadd.f32 %v696, %v704
    %709 = vset.pattern.permute.xlu0 8
    %710 = vperm.xlu0 %709, %v563
    %v711 = vpop.permute.xlu0 %710
    %v713 = vmul.f32 %v711, %v559
    %v714 = vmul.f32 %v711, %v560
    %v715 = vmul.f32 %v711, %v561
    %v716 = vmul.f32 %v711, %v562
    %v717 = vadd.f32 %v705, %v713
    %v718 = vadd.f32 %v706, %v714
    %v719 = vadd.f32 %v707, %v715
    %v720 = vadd.f32 %v708, %v716
    %v721 = vtanh.pop %v717
    %v722 = vtanh.pop %v718
    %v723 = vtanh.pop %v719
    %v724 = vtanh.pop %v720
    %725 = vset.pattern.permute.xlu0 2
    %726 = vperm.xlu0 %725, %v565
    %v727 = vpop.permute.xlu0 %726
    %v729 = vmul.f32 %v727, %v721
    %v730 = vmul.f32 %v727, %v722
    %v731 = vmul.f32 %v727, %v723
    %v732 = vmul.f32 %v727, %v724
    %v733 = vadd.f32 %v717, %v729
    %v734 = vadd.f32 %v718, %v730
    %v735 = vadd.f32 %v719, %v731
    %v736 = vadd.f32 %v720, %v732
    %v737 = vld [vmem:[%s6] sm:$0xff]
    %v738 = vld [vmem:[%s11] sm:$0xff]
    %740 = vset.pattern.permute.xlu0 0
    %741 = vperm.xlu0 %740, %v737
    %v742 = vpop.permute.xlu0 %741
    %v744 = vmul.f32 %v742, %v621
    %v745 = vmul.f32 %v742, %v622
    %v746 = vmul.f32 %v742, %v623
    %v747 = vmul.f32 %v742, %v624
    %749 = vset.pattern.permute.xlu0 0
    %750 = vperm.xlu0 %749, %v738
    %v751 = vpop.permute.xlu0 %750
    %v753 = vadd.f32 %v751, %v744
    %v754 = vadd.f32 %v751, %v745
    %v755 = vadd.f32 %v751, %v746
    %v756 = vadd.f32 %v751, %v747
    %757 = vset.pattern.permute.xlu0 1
    %758 = vperm.xlu0 %757, %v737
    %v759 = vpop.permute.xlu0 %758
    %v761 = vmul.f32 %v759, %v677
    %v762 = vmul.f32 %v759, %v678
    %v763 = vmul.f32 %v759, %v679
    %v764 = vmul.f32 %v759, %v680
    %v765 = vadd.f32 %v753, %v761
    %v766 = vadd.f32 %v754, %v762
    %v767 = vadd.f32 %v755, %v763
    %v768 = vadd.f32 %v756, %v764
    %769 = vset.pattern.permute.xlu0 2
    %770 = vperm.xlu0 %769, %v737
    %v771 = vpop.permute.xlu0 %770
    %v773 = vmul.f32 %v771, %v733
    %v774 = vmul.f32 %v771, %v734
    %v775 = vmul.f32 %v771, %v735
    %v776 = vmul.f32 %v771, %v736
    %v777 = vadd.f32 %v765, %v773
    %v778 = vadd.f32 %v766, %v774
    %v779 = vadd.f32 %v767, %v775
    %v780 = vadd.f32 %v768, %v776
    %v781 = vxor.u32 %v777, 2147483648
    %v782 = vxor.u32 %v778, 2147483648
    %v783 = vxor.u32 %v779, 2147483648
    %v784 = vxor.u32 %v780, 2147483648
    %v785 = vmul.f32 %v781, 1.442695
    %v786 = vpow.pop %v785
    %v787 = vmul.f32 %v782, 1.442695
    %v788 = vpow.pop %v787
    %v789 = vmul.f32 %v783, 1.442695
    %v790 = vpow.pop %v789
    %v791 = vmul.f32 %v784, 1.442695
    %v792 = vpow.pop %v791
    %v793 = vadd.f32 %v786, 1.0
    %v794 = vadd.f32 %v788, 1.0
    %v795 = vadd.f32 %v790, 1.0
    %v796 = vadd.f32 %v792, 1.0
    %v797 = vrcp.pop %v793
    %v798 = vmul.f32 %v793, %v797
    %v799 = vsub.f32 1.0, %v798
    %v800 = vmul.f32 %v797, %v799
    %v801 = vadd.f32 %v797, %v800
    %vm802 = vweird.f32 %v793
    %vm803 = vweird.f32 %v797
    %vm804 = vmor %vm802, %vm803
    %v805 = vsel %vm804, %v797, %v801
    %v806 = vand.u32 2147483647, %v793
    %vm807 = vcmp.eq.f32.partialorder %v806, 8.507059e+37
    %v808 = vand.u32 %v793, 2147483648
    %v809 = vor.u32 1.1754944e-38, %v808
    %v810 = vsel %vm807, %v809, %v805
    %v811 = vmul.f32 1.0, %v810
    %v812 = vrcp.pop %v794
    %v813 = vmul.f32 %v794, %v812
    %v814 = vsub.f32 1.0, %v813
    %v815 = vmul.f32 %v812, %v814
    %v816 = vadd.f32 %v812, %v815
    %vm817 = vweird.f32 %v794
    %vm818 = vweird.f32 %v812
    %vm819 = vmor %vm817, %vm818
    %v820 = vsel %vm819, %v812, %v816
    %v821 = vand.u32 2147483647, %v794
    %vm822 = vcmp.eq.f32.partialorder %v821, 8.507059e+37
    %v823 = vand.u32 %v794, 2147483648
    %v824 = vor.u32 1.1754944e-38, %v823
    %v825 = vsel %vm822, %v824, %v820
    %v826 = vmul.f32 1.0, %v825
    %v827 = vrcp.pop %v795
    %v828 = vmul.f32 %v795, %v827
    %v829 = vsub.f32 1.0, %v828
    %v830 = vmul.f32 %v827, %v829
    %v831 = vadd.f32 %v827, %v830
    %vm832 = vweird.f32 %v795
    %vm833 = vweird.f32 %v827
    %vm834 = vmor %vm832, %vm833
    %v835 = vsel %vm834, %v827, %v831
    %v836 = vand.u32 2147483647, %v795
    %vm837 = vcmp.eq.f32.partialorder %v836, 8.507059e+37
    %v838 = vand.u32 %v795, 2147483648
    %v839 = vor.u32 1.1754944e-38, %v838
    %v840 = vsel %vm837, %v839, %v835
    %v841 = vmul.f32 1.0, %v840
    %v842 = vrcp.pop %v796
    %v843 = vmul.f32 %v796, %v842
    %v844 = vsub.f32 1.0, %v843
    %v845 = vmul.f32 %v842, %v844
    %v846 = vadd.f32 %v842, %v845
    %vm847 = vweird.f32 %v796
    %vm848 = vweird.f32 %v842
    %vm849 = vmor %vm847, %vm848
    %v850 = vsel %vm849, %v842, %v846
    %v851 = vand.u32 2147483647, %v796
    %vm852 = vcmp.eq.f32.partialorder %v851, 8.507059e+37
    %v853 = vand.u32 %v796, 2147483648
    %v854 = vor.u32 1.1754944e-38, %v853
    %v855 = vsel %vm852, %v854, %v850
    %v856 = vmul.f32 1.0, %v855
    %v861 = vrot.slane %v811, 4
    %v862 = vrot.slane %v826, 4
    %v863 = vrot.slane %v841, 4
    %v864 = vrot.slane %v856, 4
    %v869 = vsub.f32 %v811, %v861
    %v870 = vsub.f32 %v826, %v862
    %v871 = vsub.f32 %v841, %v863
    %v872 = vsub.f32 %v856, %v864
    %v873 = vmax.f32 %v869, 1e-09
    %v874 = vmax.f32 %v870, 1e-09
    %v875 = vmax.f32 %v871, 1e-09
    %v876 = vmax.f32 %v872, 1e-09
    %881 = vst.sshfl [vmem:[#allocation1] sm:$0xff pattern:$0x75316420] %v873
    %882 = vst.sshfl [vmem:[#allocation1 + $0x8] sm:$0xff pattern:$0x75316420] %v874
    %883 = vst.sshfl [vmem:[#allocation1 + $0x10] sm:$0xff pattern:$0x75316420] %v875
    %884 = vst.sshfl [vmem:[#allocation1 + $0x18] sm:$0xff pattern:$0x75316420] %v876
    %s885 = scalar_lea.vmem [#allocation1], 1
    %v886 = vld [vmem:[%s885] ss:$2 sm:$0xff]
    %s887 = scalar_lea.vmem [#allocation1], 17
    %v888 = vld [vmem:[%s887] ss:$2 sm:$0xff]
    %891 = vst [vmem:[#allocation4] sm:$0xff] %v886
    %892 = vst [vmem:[#allocation4 + $0x8] sm:$0xff] %v888
    // Predicated region
    $region66: #{tpu_custom_call.1} parent=1 // pred_check
      _
    $region67: #{tpu_custom_call.1} parent=1 // pred_check_branch
      %894 = sbr.rel (0) target = $region69
    $region68: #{tpu_custom_call.1} parent=1 // pred_region
      %896 = vsyncadd [#allocation3], 0
      %s898 = sshll.u32 [#allocation2], 4
      %s899 = int_to_ptr.vmem [resolvable:$true] %s898
      %s900 = sshll.u32 %s16, 4
      %s901 = int_to_ptr.hbm [resolvable:$true] %s900
      %903 = dma.vmem_to_hbm [thread:$0]  %s899, 256, %s901, [#allocation3]
    $region69: #{tpu_custom_call.1} parent=1 // pred_fallthru
      _
    // Predicated region
    $region70: #{tpu_custom_call.1} parent=1 // pred_check
      _
    $region71: #{tpu_custom_call.1} parent=1 // pred_check_branch
      %905 = sbr.rel (0) target = $region73
    $region72: #{tpu_custom_call.1} parent=1 // pred_region
      %907 = vsyncadd [#allocation5], 0
      %s909 = sshll.u32 [#allocation4], 4
      %s910 = int_to_ptr.vmem [resolvable:$true] %s909
      %s911 = sshll.u32 %s17, 4
      %s912 = int_to_ptr.hbm [resolvable:$true] %s911
      %914 = dma.vmem_to_hbm [thread:$0]  %s910, 256, %s912, [#allocation5]
    $region73: #{tpu_custom_call.1} parent=1 // pred_fallthru
      _
    // Predicated region
    $region74: #{tpu_custom_call.1} parent=1 // pred_check
      _
    $region75: #{tpu_custom_call.1} parent=1 // pred_check_branch
      %916 = sbr.rel (0) target = $region77
    $region76: #{tpu_custom_call.1} parent=1 // pred_region
      %918 = dma.done [#allocation3], 256
    $region77: #{tpu_custom_call.1} parent=1 // pred_fallthru
      _
    // Predicated region
    $region78: #{tpu_custom_call.1} parent=1 // pred_check
      _
    $region79: #{tpu_custom_call.1} parent=1 // pred_check_branch
      %920 = sbr.rel (0) target = $region81
    $region80: #{tpu_custom_call.1} parent=1 // pred_region
      %922 = dma.done [#allocation5], 256
    $region81: #{tpu_custom_call.1} parent=1 // pred_fallthru
      _
    %923 = vsyncpa [#allocation3], 1
    %924 = vsyncpa [#allocation5], 1

</llo_original>
